<compile_context>
chip_gen: v7x
topology: tpu7x:2x2x1
jax: 0.10.0
libtpu: 0.0.40
codegen_flags: <defaults>
</compile_context>

<pallas_src>
import functools

import jax
import jax.numpy as jnp
from jax.experimental import pallas as pl
from jax.experimental.pallas import tpu as pltpu

LN_EPS = 1e-5
NEG_INF = -1e30


def _round_up(x, m):
    return ((x + m - 1) // m) * m


def _layernorm(v, w, b):
    # LayerNorm subclass of the reference: statistics in float32.
    v32 = v.astype(jnp.float32)
    mu = jnp.mean(v32, axis=-1, keepdims=True)
    var = jnp.mean(jnp.square(v32 - mu), axis=-1, keepdims=True)
    return (v32 - mu) * jax.lax.rsqrt(var + LN_EPS) * w + b


def _tpu_vmem_capacity():
    try:
        return int(pltpu.get_tpu_info().vmem_capacity_bytes)
    except Exception:
        return None


def _vmem_limit_bytes():
    cap = _tpu_vmem_capacity()
    if cap is None:
        return 64 * 1024 * 1024                       # safe on every generation
    # ~100-110 MiB on 128 MiB chips (v5e/v6e), ~54 MiB on 64 MiB chips (v7x).
    return min(int(cap * 0.85), 110 * 1024 * 1024)


def _pick_bt(B, D, Lp, target=8):
    """Batch-block size: amortize per-layer weight DMA across Bt images, bounded by VMEM."""
    cap = _tpu_vmem_capacity()
    if cap is None:
        cap = 64 * 1024 * 1024
    budget = int(cap * 0.75)
    weight_bytes = 2 * (12 * D * D * 2)               # double-buffered bf16 layer weights
    per_img = Lp * D * 56                             # x_sc f32 + attn slab bf16 + temps + out bufs
    cap_bt = max(1, (budget - weight_bytes) // max(per_img, 1))
    bt = int(max(1, min(target, B, cap_bt)))
    # prefer an exact divisor of B (no padded images) if it costs <2x amortization
    for cand in range(bt, 0, -1):
        if B % cand == 0 and cand * 2 >= bt:
            return cand
    return bt


# ----------------------------- kernel bodies ------------------------------ #

def embed_kernel(patches_ref, wpatch_ref, cls_ref, pos_ref, lnw_ref, lnb_ref, o_ref,
                 *, seq_len):
    """conv1 (as patch matmul, bf16 MXU) + class token + pos emb + ln_pre, padded to Lp."""
    Lp, D = o_ref.shape[1], o_ref.shape[2]
    p = patches_ref[0].astype(jnp.bfloat16)                                  # (N, Pd)
    emb = jnp.dot(p, wpatch_ref[...], preferred_element_type=jnp.float32)    # (N, D) f32
    w = lnw_ref[...]
    b = lnb_ref[...]
    cls_tok = cls_ref[...] + pos_ref[0:1, :]                                 # (1, D)
    o_ref[0, 0:1, :] = _layernorm(cls_tok, w, b).astype(o_ref.dtype)
    o_ref[0, 1:seq_len, :] = _layernorm(emb + pos_ref[1:seq_len, :], w, b).astype(o_ref.dtype)
    if Lp > seq_len:                                                         # static
        o_ref[0, seq_len:Lp, :] = jnp.zeros((Lp - seq_len, D), o_ref.dtype)


def block_kernel(slots_ref, emit_ref,                 # scalar-prefetch tables (SMEM)
                 x_hbm,                               # tokens, pl.ANY (HBM)
                 ln1w_ref, ln1b_ref, wqkv_ref, bqkv_ref, wout_ref, bout_ref,
                 ln2w_ref, ln2b_ref, wfc_ref, bfc_ref, wproj_ref, bproj_ref,
                 o_ref, x_sc, attn_sc, copy_sem,
                 *, num_heads, seq_len):
    """All ResidualAttentionBlocks fused. Grid axis 1 is the layer index; Bt images'
    token tensors live in VMEM scratch `x_sc` across the whole layer axis."""
    del slots_ref
    layer = pl.program_id(1)
    bidx = pl.program_id(0)
    Bt, Lp, D = x_sc.shape
    hd = D // num_heads
    scale = hd ** -0.5

    # tokens -> VMEM scratch once per batch block (no BlockSpec double-buffering)
    @pl.when(layer == 0)
    def _():
        cp = pltpu.make_async_copy(x_hbm.at[pl.ds(bidx * Bt, Bt), :, :], x_sc, copy_sem)
        cp.start()
        cp.wait()

    x = x_sc[...].reshape(Bt * Lp, D)                                        # f32

    # --- attention: x += out_proj(softmax(Q K^T / sqrt(hd)) V) ---
    h = _layernorm(x, ln1w_ref[0], ln1b_ref[0]).astype(jnp.bfloat16)
    qkv = jnp.dot(h, wqkv_ref[0], preferred_element_type=jnp.float32) + bqkv_ref[0]
    q = qkv[:, 0:D] * scale                            # scale folded once into Q
    k = qkv[:, D:2 * D]
    v = qkv[:, 2 * D:3 * D]

    if Lp > seq_len:                                   # static: mask padded keys
        key_mask = jnp.where(
            jax.lax.broadcasted_iota(jnp.int32, (1, Lp), 1) < seq_len,
            0.0, NEG_INF).astype(jnp.float32)
    else:
        key_mask = None

    # group heads so each slab store is (close to) 128 lanes wide
    heads_per_grp = max(1, min(num_heads, 128 // max(hd, 1)))
    while num_heads % heads_per_grp:
        heads_per_grp -= 1

    for img in range(Bt):                              # static unroll over images
        row = slice(img * Lp, (img + 1) * Lp)
        for g0 in range(0, num_heads, heads_per_grp):  # static unroll over head groups
            outs = []
            for hh in range(g0, g0 + heads_per_grp):
                sl = slice(hh * hd, (hh + 1) * hd)
                qh = q[row, sl].astype(jnp.bfloat16)
                kh = k[row, sl].astype(jnp.bfloat16)
                vh = v[row, sl].astype(jnp.bfloat16)
                # Q K^T without materializing kh.T (contract head-dim axes directly).
                s = jax.lax.dot_general(qh, kh, (((1,), (1,)), ((), ())),
                                        preferred_element_type=jnp.float32)  # (Lp, Lp)
                if key_mask is not None:
                    s = s + key_mask
                m = jnp.max(s, axis=-1, keepdims=True)
                p = jnp.exp(s - m)
                a = p * pl.reciprocal(jnp.sum(p, axis=-1, keepdims=True), approx=True)
                outs.append(jnp.dot(a.astype(jnp.bfloat16), vh,
                                    preferred_element_type=jnp.float32).astype(jnp.bfloat16))
            grp = outs[0] if len(outs) == 1 else jnp.concatenate(outs, axis=-1)
            attn_sc[row, g0 * hd:(g0 + heads_per_grp) * hd] = grp

    attn = jnp.dot(attn_sc[...], wout_ref[0],
                   preferred_element_type=jnp.float32) + bout_ref[0]
    x = x + attn

    # --- MLP: x += c_proj(QuickGELU(c_fc(ln_2(x)))) ---
    h2 = _layernorm(x, ln2w_ref[0], ln2b_ref[0]).astype(jnp.bfloat16)
    fc = jnp.dot(h2, wfc_ref[0], preferred_element_type=jnp.float32) + bfc_ref[0]
    fc = fc * jax.nn.sigmoid(1.702 * fc)               # QuickGELU in f32
    mlp = jnp.dot(fc.astype(jnp.bfloat16), wproj_ref[0],
                  preferred_element_type=jnp.float32) + bproj_ref[0]
    x = x + mlp

    x3 = x.reshape(Bt, Lp, D)
    x_sc[...] = x3

    # only the "needed" (feature/final) layers touch the HBM output slot
    @pl.when(emit_ref[layer] != 0)
    def _():
        o_ref[0] = x3.astype(o_ref.dtype)


def feat_head_kernel(x_ref, lnw_ref, lnb_ref, proj_ref, o_ref):
    """ln_post followed by @ proj over all tokens of one feature slot / image."""
    h = _layernorm(x_ref[0, 0], lnw_ref[...], lnb_ref[...]).astype(jnp.bfloat16)
    o_ref[0, 0] = jnp.dot(h, proj_ref[...],
                          preferred_element_type=jnp.float32).astype(o_ref.dtype)


def cls_head_kernel(x_ref, lnw_ref, lnb_ref, proj_ref, o_ref):
    """ln_post + proj on the first sublane tile only (CLS row) of the final layer."""
    h = _layernorm(x_ref[0, 0], lnw_ref[...], lnb_ref[...]).astype(jnp.bfloat16)  # (rows, D)
    out = jnp.dot(h, proj_ref[...], preferred_element_type=jnp.float32)           # (rows, Dout)
    o_ref[0] = out[0:1, :].astype(o_ref.dtype)


# ----------------------------- pallas_call wrappers ------------------------ #

def patch_embed_ln(patches, wpatch, cls_tok, pos, lnw, lnb, padded_len):
    B, N, Pd = patches.shape
    D = wpatch.shape[1]
    L = N + 1
    Lp = padded_len
    kern = functools.partial(embed_kernel, seq_len=L)
    return pl.pallas_call(
        kern,
        out_shape=jax.ShapeDtypeStruct((B, Lp, D), jnp.float32),
        grid=(B,),
        in_specs=[
            pl.BlockSpec((1, N, Pd), lambda b: (b, 0, 0)),
            pl.BlockSpec((Pd, D), lambda b: (0, 0)),
            pl.BlockSpec((1, D), lambda b: (0, 0)),
            pl.BlockSpec((L, D), lambda b: (0, 0)),
            pl.BlockSpec((1, D), lambda b: (0, 0)),
            pl.BlockSpec((1, D), lambda b: (0, 0)),
        ],
        out_specs=pl.BlockSpec((1, Lp, D), lambda b: (b, 0, 0)),
        compiler_params=pltpu.CompilerParams(dimension_semantics=("parallel",)),
    )(patches, wpatch, cls_tok, pos, lnw, lnb)


def fused_transformer(x, params, out_slot, emit, num_slots, *, num_heads, seq_len, bt):
    """All layers in one pallas_call; Bt images per grid step; writes only needed layers."""
    Bpad, Lp, D = x.shape
    NL = params['wqkv'].shape[0]
    nb = Bpad // bt
    kern = functools.partial(block_kernel, num_heads=num_heads, seq_len=seq_len)

    def wspec(*shape):
        nd = len(shape)
        return pl.BlockSpec((1,) + shape, lambda b, l, slots, emit: (l,) + (0,) * nd)

    grid_spec = pltpu.PrefetchScalarGridSpec(
        num_scalar_prefetch=2,
        grid=(nb, NL),
        in_specs=[
            pl.BlockSpec(memory_space=pl.ANY),                             # tokens (HBM)
            wspec(1, D), wspec(1, D),                                      # ln_1 w, b
            wspec(D, 3 * D), wspec(1, 3 * D),                              # in_proj (bf16), bias
            wspec(D, D), wspec(1, D),                                      # out_proj (bf16), bias
            wspec(1, D), wspec(1, D),                                      # ln_2 w, b
            wspec(D, 4 * D), wspec(1, 4 * D),                              # c_fc (bf16), bias
            wspec(4 * D, D), wspec(1, D),                                  # c_proj (bf16), bias
        ],
        out_specs=pl.BlockSpec((1, bt, Lp, D),
                               lambda b, l, slots, emit: (slots[l], b, 0, 0)),
        scratch_shapes=[pltpu.VMEM((bt, Lp, D), jnp.float32),              # resident tokens
                        pltpu.VMEM((bt * Lp, D), jnp.bfloat16),            # attn head slab
                        pltpu.SemaphoreType.DMA],                          # token DMA sem
    )
    return pl.pallas_call(
        kern,
        out_shape=jax.ShapeDtypeStruct((num_slots, Bpad, Lp, D), jnp.bfloat16),
        grid_spec=grid_spec,
        compiler_params=pltpu.CompilerParams(
            dimension_semantics=("parallel", "arbitrary"),
            vmem_limit_bytes=_vmem_limit_bytes()),
    )(out_slot, emit, x,
      params['ln1_w'], params['ln1_b'], params['wqkv'], params['bqkv'],
      params['wout'], params['bout'], params['ln2_w'], params['ln2_b'],
      params['wfc'], params['bfc'], params['wproj'], params['bproj'])


def ln_post_proj(feats, lnw, lnb, proj, num_feat_slots, B):
    """ln_post(.) @ proj for every feature slot (all tokens)."""
    S, Bpad, Lp, D = feats.shape
    Dout = proj.shape[1]
    return pl.pallas_call(
        feat_head_kernel,
        out_shape=jax.ShapeDtypeStruct((num_feat_slots, B, Lp, Dout), jnp.float32),
        grid=(num_feat_slots, B),
        in_specs=[
            pl.BlockSpec((1, 1, Lp, D), lambda s, b: (s, b, 0, 0)),
            pl.BlockSpec((1, D), lambda s, b: (0, 0)),
            pl.BlockSpec((1, D), lambda s, b: (0, 0)),
            pl.BlockSpec((D, Dout), lambda s, b: (0, 0)),
        ],
        out_specs=pl.BlockSpec((1, 1, Lp, Dout), lambda s, b: (s, b, 0, 0)),
        compiler_params=pltpu.CompilerParams(
            dimension_semantics=("parallel", "parallel")),
    )(feats, lnw, lnb, proj)


def cls_head(feats, lnw, lnb, proj, final_slot, B):
    """ln_post + proj on just the first 8 rows (CLS) of the final-layer slot."""
    S, Bpad, Lp, D = feats.shape
    Dout = proj.shape[1]
    rows = min(8, Lp)
    out = pl.pallas_call(
        cls_head_kernel,
        out_shape=jax.ShapeDtypeStruct((B, 1, Dout), jnp.float32),
        grid=(B,),
        in_specs=[
            pl.BlockSpec((1, 1, rows, D), lambda b: (final_slot, b, 0, 0)),
            pl.BlockSpec((1, D), lambda b: (0, 0)),
            pl.BlockSpec((1, D), lambda b: (0, 0)),
            pl.BlockSpec((D, Dout), lambda b: (0, 0)),
        ],
        out_specs=pl.BlockSpec((1, 1, Dout), lambda b: (b, 0, 0)),
        compiler_params=pltpu.CompilerParams(dimension_semantics=("parallel",)),
    )(feats, lnw, lnb, proj)
    return out[:, 0, :]


# ----------------------------- model glue ---------------------------------- #

def _plan_output_slots(num_layers, features_list):
    """Map every layer to the HBM output slot of the next 'needed' layer (feature layers
    + final layer) and mark which layers actually emit; non-needed layers never write."""
    feat_layers = sorted(set(int(f) for f in features_list if 1 <= int(f) <= num_layers))
    needed = sorted(set(feat_layers) | {num_layers})
    slot_of = {layer: i for i, layer in enumerate(needed)}
    out_slot, emit = [], []
    for l in range(1, num_layers + 1):
        nxt = min(n for n in needed if n >= l)
        out_slot.append(slot_of[nxt])
        emit.append(1 if l in slot_of else 0)
    return (jnp.asarray(out_slot, jnp.int32), jnp.asarray(emit, jnp.int32),
            feat_layers, slot_of, len(needed))


def init_params(key, *, width, layers, heads, output_dim, patch_size, num_patches):
    del heads
    Pd = 3 * patch_size * patch_size
    L = num_patches + 1
    scale = width ** -0.5
    keys = iter(jax.random.split(key, 4 + 8 * layers))

    def nrm(shape, s=0.02):
        return (s * jax.random.normal(next(keys), shape)).astype(jnp.float32)

    params = {
        # conv1 weight (width, 3, p, p) pre-flattened/transposed to (Pd, width), bf16
        'wpatch': nrm((width, Pd)).T.astype(jnp.bfloat16),
        'cls': (scale * jax.random.normal(next(keys), (1, width))).astype(jnp.float32),
        'pos': (scale * jax.random.normal(next(keys), (L, width))).astype(jnp.float32),
        'ln_pre_w': jnp.ones((1, width), jnp.float32),
        'ln_pre_b': jnp.zeros((1, width), jnp.float32),
        'ln_post_w': jnp.ones((1, width), jnp.float32),
        'ln_post_b': jnp.zeros((1, width), jnp.float32),
        'proj': (scale * jax.random.normal(next(keys), (width, output_dim))).astype(jnp.bfloat16),
    }

    wqkv, bqkv, wout, bout, wfc, bfc, wproj, bproj = ([] for _ in range(8))
    for _ in range(layers):
        wqkv.append(nrm((3 * width, width)).T.astype(jnp.bfloat16))   # in_proj_weight^T
        bqkv.append(nrm((1, 3 * width)))
        wout.append(nrm((width, width)).T.astype(jnp.bfloat16))       # out_proj.weight^T
        bout.append(nrm((1, width)))
        wfc.append(nrm((4 * width, width)).T.astype(jnp.bfloat16))    # c_fc.weight^T
        bfc.append(nrm((1, 4 * width)))
        wproj.append(nrm((width, 4 * width)).T.astype(jnp.bfloat16))  # c_proj.weight^T
        bproj.append(nrm((1, width)))

    params.update({
        'ln1_w': jnp.ones((layers, 1, width), jnp.float32),
        'ln1_b': jnp.zeros((layers, 1, width), jnp.float32),
        'ln2_w': jnp.ones((layers, 1, width), jnp.float32),
        'ln2_b': jnp.zeros((layers, 1, width), jnp.float32),
        'wqkv': jnp.stack(wqkv), 'bqkv': jnp.stack(bqkv),
        'wout': jnp.stack(wout), 'bout': jnp.stack(bout),
        'wfc': jnp.stack(wfc), 'bfc': jnp.stack(bfc),
        'wproj': jnp.stack(wproj), 'bproj': jnp.stack(bproj),
    })
    return params


def vision_transformer_forward(x_nchw, params, features_list, *, patch_size, num_heads,
                               token_pad_multiple=8, bt_target=8):
    """Mirrors VisionTransformer.forward for the standard (non-SelfCor) path."""
    B, C, H, W = x_nchw.shape
    p = patch_size
    gh, gw = H // p, W // p
    N = gh * gw
    L = N + 1
    # pad tokens to a sublane-friendly length (multiple of 8; NOT 128 - see perf notes)
    Lp = _round_up(L, token_pad_multiple)
    num_layers = params['wqkv'].shape[0]
    D = params['wqkv'].shape[1]

    # batch blocking: Bt images share each layer's weight DMA
    bt = _pick_bt(B, D, Lp, bt_target)
    Bpad = _round_up(B, bt)
    if Bpad > B:
        pad = jnp.zeros((Bpad - B,) + x_nchw.shape[1:], x_nchw.dtype)
        x_nchw = jnp.concatenate([x_nchw, pad], axis=0)

    # Unfold NCHW image into (Bpad, N, C*p*p) patch vectors; flattening order matches
    # torch's conv weight layout (out, C, kh, kw).  (pure layout glue)
    patches = (x_nchw.reshape(Bpad, C, gh, p, gw, p)
               .transpose(0, 2, 4, 1, 3, 5)
               .reshape(Bpad, N, C * p * p)).astype(jnp.float32)

    # conv1 + class token + positional embedding + ln_pre  (Pallas)
    x = patch_embed_ln(patches, params['wpatch'], params['cls'], params['pos'],
                       params['ln_pre_w'], params['ln_pre_b'], Lp)

    # fused transformer stack (clip_vit_standard_forward semantics)
    out_slot, emit, feat_layers, slot_of, num_slots = _plan_output_slots(
        num_layers, features_list)
    feats = fused_transformer(x, params, out_slot, emit, num_slots,
                              num_heads=num_heads, seq_len=L, bt=bt)   # (S, Bpad, Lp, D) bf16

    num_feat_slots = len(feat_layers)
    patch_token_list = []
    proj_out = None
    if num_feat_slots > 0:
        proj_out = ln_post_proj(feats, params['ln_post_w'], params['ln_post_b'],
                                params['proj'], num_feat_slots, B)     # (Sf, B, Lp, Dout)
        patch_token_list = [proj_out[slot_of[f], :, :L, :] for f in feat_layers]

    if num_layers in feat_layers:
        cls_out = proj_out[slot_of[num_layers], :, 0, :]
    else:
        cls_out = cls_head(feats, params['ln_post_w'], params['ln_post_b'],
                           params['proj'], slot_of[num_layers], B)
    return cls_out, patch_token_list


# ----------------------------- demo ----------------------------------------- #

if __name__ == "__main__":
    # Small shapes consistent with the module:
    # input_resolution=16, patch_size=8 -> 2x2 grid -> 4 patches + 1 CLS = 5 tokens
    input_resolution = 16
    patch_size = 8
    width = 64
    layers = 2
    heads = 4
    output_dim = 32
    batch = 2
    features_list = [1, 2]

    num_patches = (input_resolution // patch_size) ** 2

    key = jax.random.PRNGKey(0)
    k_x, k_p = jax.random.split(key)
    x = jax.random.normal(k_x, (batch, 3, input_resolution, input_resolution),
                          dtype=jnp.float32)
    params = init_params(k_p, width=width, layers=layers, heads=heads,
                         output_dim=output_dim, patch_size=patch_size,
                         num_patches=num_patches)

    cls_out, patch_tokens = vision_transformer_forward(
        x, params, features_list, patch_size=patch_size, num_heads=heads)

    cls_out = jax.block_until_ready(cls_out)
    for t in patch_tokens:
        jax.block_until_ready(t)

    assert cls_out.shape == (batch, output_dim)
    assert len(patch_tokens) == len(features_list)
    assert all(t.shape == (batch, num_patches + 1, output_dim) for t in patch_tokens)
    assert bool(jnp.all(jnp.isfinite(cls_out)))
    assert all(bool(jnp.all(jnp.isfinite(t))) for t in patch_tokens)

    # Also exercise the CLS-only head path (final layer is not a requested feature layer).
    cls_out2, patch_tokens2 = vision_transformer_forward(
        x, params, [1], patch_size=patch_size, num_heads=heads)
    cls_out2 = jax.block_until_ready(cls_out2)
    for t in patch_tokens2:
        jax.block_until_ready(t)
    assert cls_out2.shape == (batch, output_dim)
    assert len(patch_tokens2) == 1
    assert bool(jnp.all(jnp.isfinite(cls_out2)))

    print("KERNEL_OK")
</pallas_src>

<mosaic_0001>
module attributes {stable_mosaic.version = 11 : i64} {
  func.func @embed_kernel(%arg0: i32, %arg1: memref<1x4x192xf32, #tpu.memory_space<vmem>>, %arg2: memref<192x64xbf16, #tpu.memory_space<vmem>>, %arg3: memref<1x64xf32, #tpu.memory_space<vmem>>, %arg4: memref<5x64xf32, #tpu.memory_space<vmem>>, %arg5: memref<1x64xf32, #tpu.memory_space<vmem>>, %arg6: memref<1x64xf32, #tpu.memory_space<vmem>>, %arg7: memref<1x8x64xf32, #tpu.memory_space<vmem>>) attributes {dimension_semantics = [#tpu.dimension_semantics<parallel>], iteration_bounds = array<i64: 2>, scalar_prefetch = 0 : i64, scratch_operands = 0 : i64, tpu.core_type = #tpu.core_type<tc>, window_params = [{transform_indices = @transform_0, window_bounds = array<i64: 1, 4, 192>}, {pipeline_mode = #tpu.pipeline_mode<synchronous>, transform_indices = @transform_1, window_bounds = array<i64: 192, 64>}, {pipeline_mode = #tpu.pipeline_mode<synchronous>, transform_indices = @transform_2, window_bounds = array<i64: 1, 64>}, {pipeline_mode = #tpu.pipeline_mode<synchronous>, transform_indices = @transform_3, window_bounds = array<i64: 5, 64>}, {pipeline_mode = #tpu.pipeline_mode<synchronous>, transform_indices = @transform_4, window_bounds = array<i64: 1, 64>}, {pipeline_mode = #tpu.pipeline_mode<synchronous>, transform_indices = @transform_5, window_bounds = array<i64: 1, 64>}, {transform_indices = @transform_6, window_bounds = array<i64: 1, 8, 64>}]} {
    %c0 = arith.constant 0 : index
    %c0_0 = arith.constant 0 : index
    %c0_1 = arith.constant 0 : index
    %0 = vector.load %arg1[%c0, %c0_0, %c0_1] : memref<1x4x192xf32, #tpu.memory_space<vmem>>, vector<1x4x192xf32>
    %1 = vector.shape_cast %0 : vector<1x4x192xf32> to vector<4x192xf32>
    %2 = arith.truncf %1 : vector<4x192xf32> to vector<4x192xbf16>
    %c0_2 = arith.constant 0 : index
    %c0_3 = arith.constant 0 : index
    %3 = vector.load %arg2[%c0_2, %c0_3] : memref<192x64xbf16, #tpu.memory_space<vmem>>, vector<192x64xbf16>
    %cst = arith.constant dense<0.000000e+00> : vector<4x64xf32>
    %4 = tpu.matmul %2, %3, %cst {dimension_numbers = #tpu.dot_dimension_numbers<[1], [0], [0], [1], [0, 0, 1, 1], [], []>} : vector<4x192xbf16>, vector<192x64xbf16>, vector<4x64xf32> -> vector<4x64xf32>
    %c0_4 = arith.constant 0 : index
    %c0_5 = arith.constant 0 : index
    %5 = vector.load %arg5[%c0_4, %c0_5] : memref<1x64xf32, #tpu.memory_space<vmem>>, vector<1x64xf32>
    %c0_6 = arith.constant 0 : index
    %c0_7 = arith.constant 0 : index
    %6 = vector.load %arg6[%c0_6, %c0_7] : memref<1x64xf32, #tpu.memory_space<vmem>>, vector<1x64xf32>
    %c0_8 = arith.constant 0 : index
    %c0_9 = arith.constant 0 : index
    %7 = vector.load %arg3[%c0_8, %c0_9] : memref<1x64xf32, #tpu.memory_space<vmem>>, vector<1x64xf32>
    %c0_10 = arith.constant 0 : index
    %c0_11 = arith.constant 0 : index
    %8 = vector.load %arg4[%c0_10, %c0_11] : memref<5x64xf32, #tpu.memory_space<vmem>>, vector<1x64xf32>
    %9 = arith.addf %7, %8 : vector<1x64xf32>
    %cst_12 = arith.constant dense<0.000000e+00> : vector<1xf32>
    %10 = vector.multi_reduction <add>, %9, %cst_12 [1] : vector<1x64xf32> to vector<1xf32>
    %11 = vector.shape_cast %10 : vector<1xf32> to vector<1x1xf32>
    %cst_13 = arith.constant 6.400000e+01 : f32
    %12 = vector.broadcast %cst_13 : f32 to vector<1x1xf32>
    %13 = arith.divf %11, %12 : vector<1x1xf32>
    %14 = vector.broadcast %13 : vector<1x1xf32> to vector<1x64xf32>
    %15 = arith.subf %9, %14 : vector<1x64xf32>
    %16 = arith.mulf %15, %15 : vector<1x64xf32>
    %cst_14 = arith.constant dense<0.000000e+00> : vector<1xf32>
    %17 = vector.multi_reduction <add>, %16, %cst_14 [1] : vector<1x64xf32> to vector<1xf32>
    %18 = vector.shape_cast %17 : vector<1xf32> to vector<1x1xf32>
    %cst_15 = arith.constant 6.400000e+01 : f32
    %19 = vector.broadcast %cst_15 : f32 to vector<1x1xf32>
    %20 = arith.divf %18, %19 : vector<1x1xf32>
    %21 = vector.broadcast %13 : vector<1x1xf32> to vector<1x64xf32>
    %22 = arith.subf %9, %21 : vector<1x64xf32>
    %cst_16 = arith.constant 9.99999974E-6 : f32
    %23 = vector.broadcast %cst_16 : f32 to vector<1x1xf32>
    %24 = arith.addf %20, %23 : vector<1x1xf32>
    %25 = math.rsqrt %24 : vector<1x1xf32>
    %26 = vector.broadcast %25 : vector<1x1xf32> to vector<1x64xf32>
    %27 = arith.mulf %22, %26 : vector<1x64xf32>
    %28 = arith.mulf %27, %5 : vector<1x64xf32>
    %29 = arith.addf %28, %6 : vector<1x64xf32>
    %c0_17 = arith.constant 0 : index
    %c0_18 = arith.constant 0 : index
    %c0_19 = arith.constant 0 : index
    %30 = vector.load %arg7[%c0_17, %c0_18, %c0_19] : memref<1x8x64xf32, #tpu.memory_space<vmem>>, vector<1x1x64xf32>
    %31 = vector.shape_cast %30 : vector<1x1x64xf32> to vector<1x64xf32>
    %32 = vector.shape_cast %29 : vector<1x64xf32> to vector<1x1x64xf32>
    tpu.vector_store %arg7[%c0_17, %c0_18, %c0_19], %32 {strides = array<i32>} : memref<1x8x64xf32, #tpu.memory_space<vmem>>, vector<1x1x64xf32>,
    %c1 = arith.constant 1 : index
    %c0_20 = arith.constant 0 : index
    %33 = vector.load %arg4[%c1, %c0_20] : memref<5x64xf32, #tpu.memory_space<vmem>>, vector<4x64xf32>
    %34 = arith.addf %4, %33 : vector<4x64xf32>
    %cst_21 = arith.constant dense<0.000000e+00> : vector<4xf32>
    %35 = vector.multi_reduction <add>, %34, %cst_21 [1] : vector<4x64xf32> to vector<4xf32>
    %36 = vector.shape_cast %35 : vector<4xf32> to vector<4x1xf32>
    %cst_22 = arith.constant 6.400000e+01 : f32
    %37 = vector.broadcast %cst_22 : f32 to vector<4x1xf32>
    %38 = arith.divf %36, %37 : vector<4x1xf32>
    %39 = vector.broadcast %38 : vector<4x1xf32> to vector<4x64xf32>
    %40 = arith.subf %34, %39 : vector<4x64xf32>
    %41 = arith.mulf %40, %40 : vector<4x64xf32>
    %cst_23 = arith.constant dense<0.000000e+00> : vector<4xf32>
    %42 = vector.multi_reduction <add>, %41, %cst_23 [1] : vector<4x64xf32> to vector<4xf32>
    %43 = vector.shape_cast %42 : vector<4xf32> to vector<4x1xf32>
    %cst_24 = arith.constant 6.400000e+01 : f32
    %44 = vector.broadcast %cst_24 : f32 to vector<4x1xf32>
    %45 = arith.divf %43, %44 : vector<4x1xf32>
    %46 = vector.broadcast %38 : vector<4x1xf32> to vector<4x64xf32>
    %47 = arith.subf %34, %46 : vector<4x64xf32>
    %cst_25 = arith.constant 9.99999974E-6 : f32
    %48 = vector.broadcast %cst_25 : f32 to vector<4x1xf32>
    %49 = arith.addf %45, %48 : vector<4x1xf32>
    %50 = math.rsqrt %49 : vector<4x1xf32>
    %51 = vector.broadcast %50 : vector<4x1xf32> to vector<4x64xf32>
    %52 = arith.mulf %47, %51 : vector<4x64xf32>
    %53 = vector.broadcast %5 : vector<1x64xf32> to vector<4x64xf32>
    %54 = arith.mulf %52, %53 : vector<4x64xf32>
    %55 = vector.broadcast %6 : vector<1x64xf32> to vector<4x64xf32>
    %56 = arith.addf %54, %55 : vector<4x64xf32>
    %c0_26 = arith.constant 0 : index
    %c1_27 = arith.constant 1 : index
    %c0_28 = arith.constant 0 : index
    %57 = vector.load %arg7[%c0_26, %c1_27, %c0_28] : memref<1x8x64xf32, #tpu.memory_space<vmem>>, vector<1x4x64xf32>
    %58 = vector.shape_cast %57 : vector<1x4x64xf32> to vector<4x64xf32>
    %59 = vector.shape_cast %56 : vector<4x64xf32> to vector<1x4x64xf32>
    tpu.vector_store %arg7[%c0_26, %c1_27, %c0_28], %59 {strides = array<i32>} : memref<1x8x64xf32, #tpu.memory_space<vmem>>, vector<1x4x64xf32>,
    %cst_29 = arith.constant 0.000000e+00 : f32
    %60 = vector.broadcast %cst_29 : f32 to vector<3x64xf32>
    %c0_30 = arith.constant 0 : index
    %c5 = arith.constant 5 : index
    %c0_31 = arith.constant 0 : index
    %61 = vector.load %arg7[%c0_30, %c5, %c0_31] : memref<1x8x64xf32, #tpu.memory_space<vmem>>, vector<1x3x64xf32>
    %62 = vector.shape_cast %61 : vector<1x3x64xf32> to vector<3x64xf32>
    %63 = vector.shape_cast %60 : vector<3x64xf32> to vector<1x3x64xf32>
    tpu.vector_store %arg7[%c0_30, %c5, %c0_31], %63 {strides = array<i32>} : memref<1x8x64xf32, #tpu.memory_space<vmem>>, vector<1x3x64xf32>,
    return
  }
  func.func @transform_0(%arg0: i32) -> (i32, i32, i32) {
    %c0_i32 = arith.constant 0 : i32
    %c0_i32_0 = arith.constant 0 : i32
    %c0_i32_1 = arith.constant 0 : i32
    return %arg0, %c0_i32, %c0_i32_0 : i32, i32, i32
  }
  func.func @transform_1(%arg0: i32) -> (i32, i32) {
    %c0_i32 = arith.constant 0 : i32
    %c0_i32_0 = arith.constant 0 : i32
    %c0_i32_1 = arith.constant 0 : i32
    return %c0_i32, %c0_i32_0 : i32, i32
  }
  func.func @transform_2(%arg0: i32) -> (i32, i32) {
    %c0_i32 = arith.constant 0 : i32
    %c0_i32_0 = arith.constant 0 : i32
    %c0_i32_1 = arith.constant 0 : i32
    return %c0_i32, %c0_i32_0 : i32, i32
  }
  func.func @transform_3(%arg0: i32) -> (i32, i32) {
    %c0_i32 = arith.constant 0 : i32
    %c0_i32_0 = arith.constant 0 : i32
    %c0_i32_1 = arith.constant 0 : i32
    return %c0_i32, %c0_i32_0 : i32, i32
  }
  func.func @transform_4(%arg0: i32) -> (i32, i32) {
    %c0_i32 = arith.constant 0 : i32
    %c0_i32_0 = arith.constant 0 : i32
    %c0_i32_1 = arith.constant 0 : i32
    return %c0_i32, %c0_i32_0 : i32, i32
  }
  func.func @transform_5(%arg0: i32) -> (i32, i32) {
    %c0_i32 = arith.constant 0 : i32
    %c0_i32_0 = arith.constant 0 : i32
    %c0_i32_1 = arith.constant 0 : i32
    return %c0_i32, %c0_i32_0 : i32, i32
  }
  func.func @transform_6(%arg0: i32) -> (i32, i32, i32) {
    %c0_i32 = arith.constant 0 : i32
    %c0_i32_0 = arith.constant 0 : i32
    %c0_i32_1 = arith.constant 0 : i32
    return %arg0, %c0_i32, %c0_i32_0 : i32, i32, i32
  }
}

</mosaic_0001>

<llo_original>
// kernel: tpu_custom_call.1
$region0: #{tpu_custom_call.1}
  #allocation0 [shape = 'u32[]', space=smem, size = 0x4, offset = 0x4, fixed_abs, tag = 'smem constant byte address 0x4 - core index']
  #allocation1 [shape = 'u32[144,128]{1,0:T(1,128)}', space=vmem, size = 0x12000, scoped, tag = 'internal scratch']
  %s0 = inlined_call_operand.vmem [shape: f32[2,4,192], index: 0, kind: input, shape index: {}]
  %s1 = inlined_call_operand.vmem [shape: bf16[192,64], index: 1, kind: input, shape index: {}]
  %s2 = inlined_call_operand.vmem [shape: f32[1,64], index: 2, kind: input, shape index: {}]
  %s3 = inlined_call_operand.vmem [shape: f32[5,64], index: 3, kind: input, shape index: {}]
  %s4 = inlined_call_operand.vmem [shape: f32[1,64], index: 4, kind: input, shape index: {}]
  %s5 = inlined_call_operand.vmem [shape: f32[1,64], index: 5, kind: input, shape index: {}]
  %s6 = inlined_call_operand.hbm [shape: f32[2,8,64], index: 6, kind: output, shape index: {}]
  %s7 = sld [smem:[#allocation0]]
  $region57: #{tpu_custom_call.1} parent=0
    _
  %s9 = ssub.s32 1, %s7
  %s10 = scalar_select 0, %s9, %s7
  $region1: #{tpu_custom_call.1} parent=0
    #allocation2 [shape = 'u8[8192]{0}', space=vmem, size = 0x2000, scoped, tag = 'output window, operand 0']
    #allocation3 [shape = 's32[2]{0}', space=sflag, size = 0x8, scoped, tag = 'scoped memory for tpu_custom_call.1']
    %11 = vsyncpa [#allocation3], 0
    %s12 = scalar_lea.sflag [#allocation3], 1
    %13 = vsyncpa %s12, 0
    loop: start=0, step=1, limit=4
    $region2: #{tpu_custom_call.1} parent=1 // loop_pre_header
      _
    $region3: #{tpu_custom_call.1} parent=1 // loop_header
      %s15 = sphi 0, %s19
      %p16 = scmp.ge.s32.totalorder %s15, 4
      %s25 = sphi 0, %s27
      %s28 = sphi 0, %s25
      %s29 = sphi 0, %s28
      %s45 = sphi 0, %s29
      %s49 = sphi 0, %s49
      %s51 = sphi 0, %s49
      %s52 = sphi 0, %s51
      %s66 = sphi 0, %s52
      %s70 = sphi 0, %s70
      %s72 = sphi 0, %s70
      %s73 = sphi 0, %s72
      %s87 = sphi 0, %s73
      %s91 = sphi 0, %s91
      %s93 = sphi 0, %s91
      %s94 = sphi 0, %s93
      %s108 = sphi 0, %s94
      %s112 = sphi 0, %s112
      %s114 = sphi 0, %s112
      %s115 = sphi 0, %s114
      %s129 = sphi 0, %s115
      %s133 = sphi 0, %s133
      %s135 = sphi 0, %s133
      %s136 = sphi 0, %s135
      %s150 = sphi 0, %s136
      %s156 = sphi 0, %s158
      %s159 = sphi 0, %s156
      %s160 = sphi 0, %s159
      %s176 = sphi 0, %s160
    $region4: #{tpu_custom_call.1} parent=1 // loop_header_branch
      %18 = sbr.rel (%p16) target = $region8
    $region5: #{tpu_custom_call.1} parent=1 // loop_body
      %s20 = ssub.s32 %s15, 1
      %s21 = ssub.s32 %s15, 2
      %s22 = sadd.s32 %s15, 1
      %s23 = ssub.s32 %s15, %s22
      %p24 = scmp.eq.s32.totalorder %s23, 0
      %s26 = sadd.s32 %s25, 1
      %s27 = scalar_select %p24, %s25, %s26
      %p30 = pneg %p24
      %p31 = scmp.eq.s32.totalorder %s15, 1
      %p32 = por %p30, %p31
      %p33 = scmp.ne.s32.totalorder %s25, %s28
      %p34 = scmp.eq.s32.totalorder %s15, 0
      %p35 = por %p33, %p34
      %p36 = scmp.ne.s32.totalorder %s25, %s28
      %p37 = scmp.eq.s32.totalorder %s20, 1
      %p38 = por %p36, %p37
      %p39 = scmp.ne.s32.totalorder %s28, %s29
      %p40 = scmp.eq.s32.totalorder %s20, 0
      %p41 = por %p39, %p40
      %p42 = scmp.ne.s32.totalorder %s28, %s29
      %p43 = scmp.eq.s32.totalorder %s21, 1
      %p44 = por %p42, %p43
      %p46 = scmp.ne.s32.totalorder %s29, %s45
      %p47 = scmp.eq.s32.totalorder %s21, 0
      %p48 = por %p46, %p47
      %s50 = sadd.s32 %s49, 1
      %p53 = scmp.eq.s32.totalorder %s15, 1
      %p54 = scmp.ne.s32.totalorder %s49, %s51
      %p55 = scmp.eq.s32.totalorder %s15, 0
      %p56 = por %p54, %p55
      %p57 = scmp.ne.s32.totalorder %s49, %s51
      %p58 = scmp.eq.s32.totalorder %s20, 1
      %p59 = por %p57, %p58
      %p60 = scmp.ne.s32.totalorder %s51, %s52
      %p61 = scmp.eq.s32.totalorder %s20, 0
      %p62 = por %p60, %p61
      %p63 = scmp.ne.s32.totalorder %s51, %s52
      %p64 = scmp.eq.s32.totalorder %s21, 1
      %p65 = por %p63, %p64
      %p67 = scmp.ne.s32.totalorder %s52, %s66
      %p68 = scmp.eq.s32.totalorder %s21, 0
      %p69 = por %p67, %p68
      %s71 = sadd.s32 %s70, 1
      %p74 = scmp.eq.s32.totalorder %s15, 1
      %p75 = scmp.ne.s32.totalorder %s70, %s72
      %p76 = scmp.eq.s32.totalorder %s15, 0
      %p77 = por %p75, %p76
      %p78 = scmp.ne.s32.totalorder %s70, %s72
      %p79 = scmp.eq.s32.totalorder %s20, 1
      %p80 = por %p78, %p79
      %p81 = scmp.ne.s32.totalorder %s72, %s73
      %p82 = scmp.eq.s32.totalorder %s20, 0
      %p83 = por %p81, %p82
      %p84 = scmp.ne.s32.totalorder %s72, %s73
      %p85 = scmp.eq.s32.totalorder %s21, 1
      %p86 = por %p84, %p85
      %p88 = scmp.ne.s32.totalorder %s73, %s87
      %p89 = scmp.eq.s32.totalorder %s21, 0
      %p90 = por %p88, %p89
      %s92 = sadd.s32 %s91, 1
      %p95 = scmp.eq.s32.totalorder %s15, 1
      %p96 = scmp.ne.s32.totalorder %s91, %s93
      %p97 = scmp.eq.s32.totalorder %s15, 0
      %p98 = por %p96, %p97
      %p99 = scmp.ne.s32.totalorder %s91, %s93
      %p100 = scmp.eq.s32.totalorder %s20, 1
      %p101 = por %p99, %p100
      %p102 = scmp.ne.s32.totalorder %s93, %s94
      %p103 = scmp.eq.s32.totalorder %s20, 0
      %p104 = por %p102, %p103
      %p105 = scmp.ne.s32.totalorder %s93, %s94
      %p106 = scmp.eq.s32.totalorder %s21, 1
      %p107 = por %p105, %p106
      %p109 = scmp.ne.s32.totalorder %s94, %s108
      %p110 = scmp.eq.s32.totalorder %s21, 0
      %p111 = por %p109, %p110
      %s113 = sadd.s32 %s112, 1
      %p116 = scmp.eq.s32.totalorder %s15, 1
      %p117 = scmp.ne.s32.totalorder %s112, %s114
      %p118 = scmp.eq.s32.totalorder %s15, 0
      %p119 = por %p117, %p118
      %p120 = scmp.ne.s32.totalorder %s112, %s114
      %p121 = scmp.eq.s32.totalorder %s20, 1
      %p122 = por %p120, %p121
      %p123 = scmp.ne.s32.totalorder %s114, %s115
      %p124 = scmp.eq.s32.totalorder %s20, 0
      %p125 = por %p123, %p124
      %p126 = scmp.ne.s32.totalorder %s114, %s115
      %p127 = scmp.eq.s32.totalorder %s21, 1
      %p128 = por %p126, %p127
      %p130 = scmp.ne.s32.totalorder %s115, %s129
      %p131 = scmp.eq.s32.totalorder %s21, 0
      %p132 = por %p130, %p131
      %s134 = sadd.s32 %s133, 1
      %p137 = scmp.eq.s32.totalorder %s15, 1
      %p138 = scmp.ne.s32.totalorder %s133, %s135
      %p139 = scmp.eq.s32.totalorder %s15, 0
      %p140 = por %p138, %p139
      %p141 = scmp.ne.s32.totalorder %s133, %s135
      %p142 = scmp.eq.s32.totalorder %s20, 1
      %p143 = por %p141, %p142
      %p144 = scmp.ne.s32.totalorder %s135, %s136
      %p145 = scmp.eq.s32.totalorder %s20, 0
      %p146 = por %p144, %p145
      %p147 = scmp.ne.s32.totalorder %s135, %s136
      %p148 = scmp.eq.s32.totalorder %s21, 1
      %p149 = por %p147, %p148
      %p151 = scmp.ne.s32.totalorder %s136, %s150
      %p152 = scmp.eq.s32.totalorder %s21, 0
      %p153 = por %p151, %p152
      %s154 = ssub.s32 %s15, %s22
      %p155 = scmp.eq.s32.totalorder %s154, 0
      %s157 = sadd.s32 %s156, 1
      %s158 = scalar_select %p155, %s156, %s157
      %p161 = pneg %p155
      %p162 = scmp.eq.s32.totalorder %s15, 1
      %p163 = por %p161, %p162
      %p164 = scmp.ne.s32.totalorder %s156, %s159
      %p165 = scmp.eq.s32.totalorder %s15, 0
      %p166 = por %p164, %p165
      %p167 = scmp.ne.s32.totalorder %s156, %s159
      %p168 = scmp.eq.s32.totalorder %s20, 1
      %p169 = por %p167, %p168
      %p170 = scmp.ne.s32.totalorder %s159, %s160
      %p171 = scmp.eq.s32.totalorder %s20, 0
      %p172 = por %p170, %p171
      %p173 = scmp.ne.s32.totalorder %s159, %s160
      %p174 = scmp.eq.s32.totalorder %s21, 1
      %p175 = por %p173, %p174
      %p177 = scmp.ne.s32.totalorder %s160, %s176
      %p178 = scmp.eq.s32.totalorder %s21, 0
      %p179 = por %p177, %p178
      %p180 = scmp.le.s32.totalorder 1, %s15
      %p181 = scmp.lt.s32.totalorder %s15, 3
      %p182 = pnand %p180, %p181
      %p183 = pneg %p182
      // Predicated region
      $region9: #{tpu_custom_call.1} parent=5 // pred_check
        _
      $region10: #{tpu_custom_call.1} parent=5 // pred_check_branch
        %185 = sbr.rel (%p182) target = $region12
      $region11: #{tpu_custom_call.1} parent=5 // pred_region
        %s186 = ssub.s32 %s15, 1
        // Predicated region
        $region13: #{tpu_custom_call.1} parent=11 // pred_check
          %p187 = pneg %p62
        $region14: #{tpu_custom_call.1} parent=11 // pred_check_branch
          %189 = sbr.rel (%p187) target = $region16
        $region15: #{tpu_custom_call.1} parent=11 // pred_region
          _
        $region16: #{tpu_custom_call.1} parent=11 // pred_fallthru
          _
        // Predicated region
        $region17: #{tpu_custom_call.1} parent=11 // pred_check
          %p190 = pneg %p83
        $region18: #{tpu_custom_call.1} parent=11 // pred_check_branch
          %192 = sbr.rel (%p190) target = $region20
        $region19: #{tpu_custom_call.1} parent=11 // pred_region
          _
        $region20: #{tpu_custom_call.1} parent=11 // pred_fallthru
          _
        // Predicated region
        $region21: #{tpu_custom_call.1} parent=11 // pred_check
          %p193 = pneg %p104
        $region22: #{tpu_custom_call.1} parent=11 // pred_check_branch
          %195 = sbr.rel (%p193) target = $region24
        $region23: #{tpu_custom_call.1} parent=11 // pred_region
          _
        $region24: #{tpu_custom_call.1} parent=11 // pred_fallthru
          _
        // Predicated region
        $region25: #{tpu_custom_call.1} parent=11 // pred_check
          %p196 = pneg %p125
        $region26: #{tpu_custom_call.1} parent=11 // pred_check_branch
          %198 = sbr.rel (%p196) target = $region28
        $region27: #{tpu_custom_call.1} parent=11 // pred_region
          _
        $region28: #{tpu_custom_call.1} parent=11 // pred_fallthru
          _
        // Predicated region
        $region29: #{tpu_custom_call.1} parent=11 // pred_check
          %p199 = pneg %p146
        $region30: #{tpu_custom_call.1} parent=11 // pred_check_branch
          %201 = sbr.rel (%p199) target = $region32
        $region31: #{tpu_custom_call.1} parent=11 // pred_region
          _
        $region32: #{tpu_custom_call.1} parent=11 // pred_fallthru
          _
      $region12: #{tpu_custom_call.1} parent=5 // pred_fallthru
        _
      %p202 = scmp.lt.s32.totalorder %s15, 2
      // Predicated region
      $region33: #{tpu_custom_call.1} parent=5 // pred_check
        %p203 = pneg %p202
      $region34: #{tpu_custom_call.1} parent=5 // pred_check_branch
        %205 = sbr.rel (%p203) target = $region36
      $region35: #{tpu_custom_call.1} parent=5 // pred_region
        // Predicated region
        $region37: #{tpu_custom_call.1} parent=35 // pred_check
          %p206 = pneg %p35
        $region38: #{tpu_custom_call.1} parent=35 // pred_check_branch
          %208 = sbr.rel (%p206) target = $region40
        $region39: #{tpu_custom_call.1} parent=35 // pred_region
          %p209 = scmp.lt.s32.totalorder %s15, 1
          %s210 = scalar_select %p209, %s15, 1
          %s211 = smul.addr %s210, 2
          %s212 = smul.addr %s211, 4
          %s213 = scalar_lea.vmem %s0, %s212
        $region40: #{tpu_custom_call.1} parent=35 // pred_fallthru
          _
      $region36: #{tpu_custom_call.1} parent=5 // pred_fallthru
        _
      %p214 = scmp.le.s32.totalorder 1, %s15
      %p215 = scmp.lt.s32.totalorder %s15, 3
      %p216 = pnand %p214, %p215
      %p217 = pneg %p216
      // Predicated region
      $region41: #{tpu_custom_call.1} parent=5 // pred_check
        _
      $region42: #{tpu_custom_call.1} parent=5 // pred_check_branch
        %219 = sbr.rel (%p216) target = $region44
      $region43: #{tpu_custom_call.1} parent=5 // pred_region
        %s220 = ssub.s32 %s15, 1
        %p221 = scmp.lt.s32.totalorder %s20, 1
        %s222 = scalar_select %p221, %s20, 1
        %s223 = smul.addr %s222, 2
        %s224 = smul.addr %s223, 4
        %s225 = scalar_lea.vmem %s0, %s224
        %p226 = pneg %p41
        %p227 = pneg %p38
        %p228 = pneg %p62
        %p229 = pneg %p59
        %p230 = pneg %p83
        %p231 = pneg %p80
        %p232 = pneg %p104
        %p233 = pneg %p101
        %p234 = pneg %p125
        %p235 = pneg %p122
        %p236 = pneg %p146
        %p237 = pneg %p143
        %p238 = pneg %p172
        %p239 = pneg %p169
        %s240 = sand.u32 %s159, 1
        %s241 = scalar_lea.sflag [#allocation3], %s240
        %s242 = sand.u32 %s159, 1
        %s243 = smul.addr %s242, 8
        %s244 = scalar_lea.vmem [#allocation2], %s243
        %p245 = scmp.lt.s32.totalorder %s20, 1
        %s246 = scalar_select %p245, %s20, 1
        %s247 = smul.addr %s246, 2
        %s248 = smul.addr %s247, 4
        %s249 = scalar_lea.vmem %s0, %s248
        %v251 = vld [vmem:[%s249] sm:$0xff]
        %v253 = vcombine.high %v251, %v251
        %v255 = vpack.c.bf16 %v251, %v251
        %v256 = vpack.c.bf16 %v253, %v253
        %v257 = vld [vmem:[%s1] sm:$0xf]
        %v258 = vld [vmem:[%s1 + $0x4] sm:$0xf]
        %v259 = vld [vmem:[%s1 + $0x8] sm:$0xf]
        %v260 = vld [vmem:[%s1 + $0xc] sm:$0xf]
        %v261 = vld [vmem:[%s1 + $0x10] sm:$0xf]
        %v262 = vld [vmem:[%s1 + $0x14] sm:$0xf]
        %v263 = vld [vmem:[%s1 + $0x18] sm:$0xf]
        %v264 = vld [vmem:[%s1 + $0x1c] sm:$0xf]
        %v265 = vld [vmem:[%s1 + $0x20] sm:$0xf]
        %v266 = vld [vmem:[%s1 + $0x24] sm:$0xf]
        %v267 = vld [vmem:[%s1 + $0x28] sm:$0xf]
        %v268 = vld [vmem:[%s1 + $0x2c] sm:$0xf]
        %v269 = vld [vmem:[%s1 + $0x30] sm:$0xf]
        %v270 = vld [vmem:[%s1 + $0x34] sm:$0xf]
        %v271 = vld [vmem:[%s1 + $0x38] sm:$0xf]
        %v272 = vld [vmem:[%s1 + $0x3c] sm:$0xf]
        %v273 = vld [vmem:[%s1 + $0x40] sm:$0xf]
        %v274 = vld [vmem:[%s1 + $0x44] sm:$0xf]
        %v275 = vld [vmem:[%s1 + $0x48] sm:$0xf]
        %v276 = vld [vmem:[%s1 + $0x4c] sm:$0xf]
        %v277 = vld [vmem:[%s1 + $0x50] sm:$0xf]
        %v278 = vld [vmem:[%s1 + $0x54] sm:$0xf]
        %v279 = vld [vmem:[%s1 + $0x58] sm:$0xf]
        %v280 = vld [vmem:[%s1 + $0x5c] sm:$0xf]
        %v281 = vld [vmem:[%s4] sm:$0x1]
        %v282 = vld [vmem:[%s5] sm:$0x1]
        %v283 = vld [vmem:[%s2] sm:$0x1]
        %v284 = vld [vmem:[%s3] sm:$0x1]
        %v285 = vadd.f32 %v283, %v284
        %vm286 = vcmask 516096
        %v287 = vsel %vm286, %v285, 0.0
        %288 = vadd.xlane.f32.xlu0 %v287
        %v289 = vpop.xlane.xlu0 %288
        %v290 = vrcp.pop 64.0
        %v291 = vmul.f32 %v289, %v290
        %v292 = vsub.f32 %v285, %v291
        %v293 = vmul.f32 %v292, %v292
        %v294 = vsel %vm286, %v293, 0.0
        %295 = vadd.xlane.f32.xlu0 %v294
        %v296 = vpop.xlane.xlu0 %295
        %v297 = vmul.f32 %v296, %v290
        %v298 = vadd.f32 %v297, 1e-05
        %v299 = vrsqrt.pop %v298
        %v300 = vmul.f32 %v292, %v299
        %v301 = vmul.f32 %v300, %v281
        %v302 = vadd.f32 %v301, %v282
        %303 = vst.msk [vmem:[%s244] sm:$0x1] %vm286, %v302
        %v304 = vld [vmem:[%s3 + $0x1] sm:$0xf]
        %v329 = vunpack.c.l.b16 %v257
        %v330 = vunpack.c.l.b16 %v258
        %v331 = vunpack.c.l.b16 %v259
        %v332 = vunpack.c.l.b16 %v260
        %v333 = vunpack.c.l.b16 %v261
        %v334 = vunpack.c.l.b16 %v262
        %v335 = vunpack.c.l.b16 %v263
        %v336 = vunpack.c.l.b16 %v264
        %v337 = vunpack.c.l.b16 %v265
        %v338 = vunpack.c.l.b16 %v266
        %v339 = vunpack.c.l.b16 %v267
        %v340 = vunpack.c.l.b16 %v268
        %v341 = vunpack.c.l.b16 %v269
        %v342 = vunpack.c.l.b16 %v270
        %v343 = vunpack.c.l.b16 %v271
        %v344 = vunpack.c.l.b16 %v272
        %v345 = vunpack.c.l.b16 %v273
        %v346 = vunpack.c.l.b16 %v274
        %v347 = vunpack.c.l.b16 %v275
        %v348 = vunpack.c.l.b16 %v276
        %v349 = vunpack.c.l.b16 %v277
        %v350 = vunpack.c.l.b16 %v278
        %v351 = vunpack.c.l.b16 %v279
        %v352 = vunpack.c.l.b16 %v280
        %v353 = vpack.c.b16 %v330, %v329
        %v354 = vpack.c.b16 %v332, %v331
        %v355 = vpack.c.b16 %v334, %v333
        %v356 = vpack.c.b16 %v336, %v335
        %v357 = vpack.c.b16 %v338, %v337
        %v358 = vpack.c.b16 %v340, %v339
        %v359 = vpack.c.b16 %v342, %v341
        %v360 = vpack.c.b16 %v344, %v343
        %v361 = vpack.c.b16 %v346, %v345
        %v362 = vpack.c.b16 %v348, %v347
        %v363 = vpack.c.b16 %v350, %v349
        %v364 = vpack.c.b16 %v352, %v351
        %vm377 = vcmask 523264
        %v379 = vsel %vm377, %v256, 0
        %381 = vmatprep.subr.bf16.mxu0 0
        %382 = vmatpush1.bf16.msra.mxu0 %v353
        %383 = vmatprep.subr.bf16.mxu0 0
        %384 = vmatpush1.bf16.msra.mxu0 %v354
        %385 = vmatprep.subr.bf16.mxu0 0
        %386 = vmatpush1.bf16.msra.mxu0 %v355
        %387 = vmatprep.subr.bf16.mxu0 0
        %388 = vmatpush1.bf16.msra.mxu0 %v356
        %389 = vmatprep.subr.bf16.mxu0 0
        %390 = vmatpush1.bf16.msra.mxu0 %v357
        %391 = vmatprep.subr.bf16.mxu0 0
        %392 = vmatpush1.bf16.msra.mxu0 %v358
        %393 = vmatprep.subr.bf16.mxu0 0
        %394 = vmatpush1.bf16.msra.mxu0 %v359
        %395 = vmatprep.subr.bf16.mxu0 0
        %396 = vmatpush1.bf16.msra.mxu0 %v360
        %397 = vmatprep.subr.bf16.mxu0 0
        %398 = vmatpush1.bf16.msra.mxu0 %v361
        %399 = vmatprep.subr.bf16.mxu0 0
        %400 = vmatpush1.bf16.msra.mxu0 %v362
        %401 = vmatprep.subr.bf16.mxu0 0
        %402 = vmatpush1.bf16.msra.mxu0 %v363
        %403 = vmatprep.subr.bf16.mxu0 0
        %404 = vmatpush1.bf16.msra.mxu0 %v364
        %405 = vmatprep.subr.bf16.mxu0 0
        %406 = vmatpush1.bf16.msra.mxu0 0
        %407 = vmatprep.subr.bf16.mxu0 0
        %408 = vmatpush1.bf16.msra.mxu0 0
        %409 = vmatprep.subr.bf16.mxu0 0
        %410 = vmatpush1.bf16.msra.mxu0 0
        %411 = vmatprep.subr.bf16.mxu0 0
        %412 = vmatpush1.bf16.msra.mxu0 0
        %413 = vmatprep.mubr.bf16.mxu0 %v379
        %414 = vmatmul.mubr.bf16.gmra.mrb[0].mxu0 %v255
        %v415 = vpop.f32.mrb[0].mxu0
        %v416 = vadd.f32 %v304, %v415
        %v417 = vpop.f32.mrb[0].mxu0
        %v418 = vpop.f32.mrb[0].mxu0
        %v419 = vpop.f32.mrb[0].mxu0
        %420 = vdwg.mxu0
        %vm421 = vcmask 519168
        %v422 = vsel %vm421, %v416, 0.0
        %423 = vadd.xlane.f32.xlu0 %v422
        %v424 = vpop.xlane.xlu0 %423
        %v425 = vmul.f32 %v424, %v290
        %v426 = vsub.f32 %v416, %v425
        %v427 = vmul.f32 %v426, %v426
        %v428 = vsel %vm421, %v427, 0.0
        %429 = vadd.xlane.f32.xlu0 %v428
        %v430 = vpop.xlane.xlu0 %429
        %v431 = vmul.f32 %v430, %v290
        %v432 = vadd.f32 %v431, 1e-05
        %v433 = vrsqrt.pop %v432
        %v434 = vmul.f32 %v426, %v433
        %v436 = vlaneseq
        %v437 = vshrl.u32 %v436, 7
        %v438 = vsub.s32 0, %v437
        %v439 = vrot.slane %v281, %v438
        %v441 = vmul.f32 %v434, %v439
        %v443 = vlaneseq
        %v444 = vshrl.u32 %v443, 7
        %v445 = vsub.s32 0, %v444
        %v446 = vrot.slane %v282, %v445
        %v448 = vadd.f32 %v441, %v446
        %449 = vst.msk [vmem:[%s244 + $0x1] sm:$0xf] %vm421, %v448
        %vm450 = vcmask 518144
        %451 = vst.msk [vmem:[%s244 + $0x5] sm:$0x7] %vm450, 0.0
        %s452 = sand.u32 %s159, 1
        %s453 = scalar_lea.sflag [#allocation3], %s452
        %s454 = sand.u32 %s159, 1
        %s455 = smul.addr %s454, 8
        %s456 = scalar_lea.vmem [#allocation2], %s455
        // Predicated region
        $region45: #{tpu_custom_call.1} parent=43 // pred_check
          %p457 = pneg %p169
        $region46: #{tpu_custom_call.1} parent=43 // pred_check_branch
          %459 = sbr.rel (%p457) target = $region48
        $region47: #{tpu_custom_call.1} parent=43 // pred_region
          %s461 = ssub.s32 128, 128
          %462 = vsyncadd %s453, %s461
          %s463 = smul.addr %s20, 128
          %s464 = scalar_lea.hbm %s6, %s463
          %s466 = sshll.u32 %s456, 4
          %s467 = int_to_ptr.vmem [resolvable:$true] %s466
          %469 = dma.vmem_to_hbm [thread:$0]  %s467, 128, %s464, %s453
        $region48: #{tpu_custom_call.1} parent=43 // pred_fallthru
          _
      $region44: #{tpu_custom_call.1} parent=5 // pred_fallthru
        _
      %p470 = scmp.le.s32.totalorder 2, %s15
      // Predicated region
      $region49: #{tpu_custom_call.1} parent=5 // pred_check
        %p471 = pneg %p470
      $region50: #{tpu_custom_call.1} parent=5 // pred_check_branch
        %473 = sbr.rel (%p471) target = $region52
      $region51: #{tpu_custom_call.1} parent=5 // pred_region
        %s474 = ssub.s32 %s15, 2
        // Predicated region
        $region53: #{tpu_custom_call.1} parent=51 // pred_check
          %p475 = pneg %p175
        $region54: #{tpu_custom_call.1} parent=51 // pred_check_branch
          %477 = sbr.rel (%p475) target = $region56
        $region55: #{tpu_custom_call.1} parent=51 // pred_region
          %s478 = sand.u32 %s160, 1
          %s479 = scalar_lea.sflag [#allocation3], %s478
          %s480 = sand.u32 %s160, 1
          %s481 = smul.addr %s480, 8
          %s482 = scalar_lea.vmem [#allocation2], %s481
          %483 = dma.done %s479, 128
        $region56: #{tpu_custom_call.1} parent=51 // pred_fallthru
          _
      $region52: #{tpu_custom_call.1} parent=5 // pred_fallthru
        _
    $region6: #{tpu_custom_call.1} parent=1 // loop_footer
      %s19 = sadd.s32 1, %s15
    $region7: #{tpu_custom_call.1} parent=1 // loop_footer_branch
      %14 = sbr.rel target = $region3
    $region8: #{tpu_custom_call.1} parent=1 // loop_exit
      _
    %484 = vsyncpa [#allocation3], 1
    %s485 = scalar_lea.sflag [#allocation3], 1
    %486 = vsyncpa %s485, 1

</llo_original>
